<compile_context>
chip_gen: v7x
topology: tpu7x:2x2x1
jax: 0.10.0
libtpu: 0.0.40
codegen_flags: <defaults>
</compile_context>

<pallas_src>
import functools
import math

import jax
import jax.numpy as jnp
from jax.experimental import pallas as pl
from jax.experimental.pallas import tpu as pltpu


def _round_up(n: int, m: int) -> int:
    return ((n + m - 1) // m) * m


@functools.lru_cache(maxsize=None)
def _vmem_capacity_bytes() -> int:
    """Physical VMEM of this TPU generation (fallback: v7x's 64 MiB/TC)."""
    try:
        return int(pltpu.get_tpu_info().vmem_capacity_bytes)
    except Exception:
        return 64 << 20


def _fused_stack_kernel(*refs, activations, compute_dtype):
    """refs = (x_ref, w0_ref, b0_ref, w1_ref, b1_ref, ..., o_ref).

    Runs the whole Linear -> activation chain on one (TB, F) batch tile.
    Matmuls accumulate in f32 on the MXU; activations are computed in f32;
    intermediates never leave VMEM/vregs.
    """
    x_ref = refs[0]
    o_ref = refs[-1]
    wb_refs = refs[1:-1]

    h = x_ref[...]                               # (TB, F0), input dtype
    for li, act in enumerate(activations):
        w = wb_refs[2 * li][...]                 # (Fin[_pad], Fout_pad), compute_dtype
        b = wb_refs[2 * li + 1][...]             # (1, Fout_pad), f32; softmax pad=-1e30
        y = jnp.dot(h.astype(compute_dtype), w,
                    preferred_element_type=jnp.float32)
        y = y + b                                # broadcast bias over batch (f32)

        if act == "sigmoid":
            # tanh identity: a single EUP op (vs exp + reciprocal) and exact.
            y = 0.5 * (1.0 + jnp.tanh(0.5 * y))
        elif act == "softmax":
            # Padded lanes already carry a -1e30 bias -> no extra mask needed.
            m = jnp.max(y, axis=-1, keepdims=True)
            e = jnp.exp(y - m)
            s = jnp.sum(e, axis=-1, keepdims=True)
            y = e / s                            # exact divide: rows sum to 1
        # else: identity
        h = y                                    # f32; recast at the next matmul

    o_ref[...] = h.astype(o_ref.dtype)


def fused_forward(x, *padded_params, activations, out_features, compute_dtype,
                  single_buffer_weights=True):
    """Whole classifier stack as a single Pallas call.

    x:             [B, F0] (any float dtype; cast to compute_dtype in-kernel)
    padded_params: flat (w0_p, b0_p, w1_p, b1_p, ...) — pre-padded in __init__.
    """
    num_layers = len(activations)
    assert len(padded_params) == 2 * num_layers
    B, F0 = x.shape
    dims = [int(F0)] + [int(f) for f in out_features]
    f_last = dims[-1]
    f_last_pad = int(padded_params[-1].shape[-1])

    # Batch tiling: sublane-aligned tile, capped at 512; force >=2 grid steps
    # (v7x megacore) whenever the batch is big enough to split; full-dim tile
    # for tiny batches (block == full dim is always legal).
    sub = 8
    if B <= sub:
        tb = B
    else:
        tb = min(512, _round_up(B, sub))
        if pl.cdiv(B, tb) == 1:
            tb = _round_up(pl.cdiv(B, 2), sub)   # split batch over both TCs
    nb = pl.cdiv(B, tb)

    wb_kwargs = {}
    if single_buffer_weights:
        # Constant index_map -> weights/biases are never re-DMA'd; a single
        # buffer halves their resident VMEM footprint.
        wb_kwargs["pipeline_mode"] = pl.Buffered(1)

    in_specs = [pl.BlockSpec((tb, F0), lambda i: (i, 0))]
    for li in range(num_layers):
        w = padded_params[2 * li]
        b = padded_params[2 * li + 1]
        in_specs.append(pl.BlockSpec(w.shape, lambda i: (0, 0), **wb_kwargs))
        in_specs.append(pl.BlockSpec(b.shape, lambda i: (0, 0), **wb_kwargs))
    out_spec = pl.BlockSpec((tb, f_last_pad), lambda i: (i, 0))

    # VMEM budget: pipelined x/out tiles + resident params + headroom,
    # clamped to ~80% of this generation's physical VMEM.
    wb_bufs = 1 if single_buffer_weights else 2
    need = 2 * tb * F0 * x.dtype.itemsize + 2 * tb * f_last_pad * 4
    for li in range(num_layers):
        w = padded_params[2 * li]
        b = padded_params[2 * li + 1]
        need += wb_bufs * (w.size * w.dtype.itemsize + b.size * 4)
    vmem_limit = int(min(max(need + (4 << 20), 16 << 20),
                         int(0.8 * _vmem_capacity_bytes())))
    # TODO(synk): layers whose weights exceed this budget need a K grid axis
    # ("arbitrary", last) with an f32 accumulator scratch.

    # Advisory cost estimate from the real (unpadded) dims.
    cd_size = jnp.dtype(compute_dtype).itemsize
    flops = sum(2 * B * dims[i] * dims[i + 1] for i in range(num_layers))
    transcendentals = sum(B * dims[i + 1] for i in range(num_layers)
                          if activations[i] in ("sigmoid", "softmax"))
    bytes_accessed = x.size * x.dtype.itemsize + B * f_last * 4
    bytes_accessed += sum(dims[i] * dims[i + 1] * cd_size + dims[i + 1] * 4
                          for i in range(num_layers))

    kernel = functools.partial(
        _fused_stack_kernel,
        activations=tuple(activations),
        compute_dtype=compute_dtype,
    )

    out_padded = pl.pallas_call(
        kernel,
        out_shape=jax.ShapeDtypeStruct((B, f_last_pad), jnp.float32),
        grid=(nb,),
        in_specs=in_specs,
        out_specs=out_spec,
        compiler_params=pltpu.CompilerParams(
            dimension_semantics=("parallel",),
            vmem_limit_bytes=vmem_limit,
        ),
        cost_estimate=pl.CostEstimate(
            flops=int(flops),
            transcendentals=int(transcendentals),
            bytes_accessed=int(bytes_accessed),
        ),
    )(x, *padded_params)

    return out_padded[:, :f_last]


class LinearActivationClassifier:
    """JAX/Pallas port of the PyTorch LinearActivationClassifier.

    Weights are stored [in_features, out_features] (transposed from
    torch.nn.Linear) and initialized like torch's default:
    U(-1/sqrt(fan_in), 1/sqrt(fan_in)).  Padded, compute-dtype copies are built
    once at construction time and reused by every forward call.
    """

    def __init__(self, in_features, out_features=(1,), activations=(None,),
                 key=None, compute_dtype=jnp.bfloat16):
        assert len(out_features) == len(activations)
        self.in_features = int(in_features)
        self.out_features = [int(f) for f in out_features]
        self.activations = list(activations)
        self.compute_dtype = compute_dtype
        if key is None:
            key = jax.random.PRNGKey(0)

        # Master f32 parameters.
        self.params = []
        fin = self.in_features
        for fout in self.out_features:
            key, kw, kb = jax.random.split(key, 3)
            bound = 1.0 / math.sqrt(fin)
            w = jax.random.uniform(kw, (fin, fout), jnp.float32, -bound, bound)
            b = jax.random.uniform(kb, (fout,), jnp.float32, -bound, bound)
            self.params.append((w, b))
            fin = fout

        # Pre-padded / pre-cast copies (done ONCE, outside the jitted forward):
        #  * w: [Fin (first layer: unpadded) or Fin_pad, Fout_pad] in compute_dtype
        #  * b: [1, Fout_pad] in f32; padded lanes of softmax layers get -1e30
        #    so the kernel needs no extra mask.
        self._flat_params = []
        fin = self.in_features
        for li, (w, b) in enumerate(self.params):
            fout = self.out_features[li]
            fin_blk = fin if li == 0 else _round_up(fin, 128)
            fout_pad = _round_up(fout, 128)
            w_p = jnp.pad(w.astype(compute_dtype),
                          ((0, fin_blk - fin), (0, fout_pad - fout)))
            pad_val = -1e30 if self.activations[li] == "softmax" else 0.0
            b_p = jnp.pad(b.astype(jnp.float32), (0, fout_pad - fout),
                          constant_values=pad_val).reshape(1, -1)
            self._flat_params.extend([w_p, b_p])
            fin = fout

        self._single_buffer = True
        self._forward = self._build_forward(True)

    def _build_forward(self, single_buffer):
        return jax.jit(functools.partial(
            fused_forward,
            activations=tuple(self.activations),
            out_features=tuple(self.out_features),
            compute_dtype=self.compute_dtype,
            single_buffer_weights=single_buffer,
        ))

    def __call__(self, x):
        try:
            return self._forward(x, *self._flat_params)
        except Exception:
            if not self._single_buffer:
                raise
            # pl.Buffered(1) unsupported on this jax version -> fall back to
            # default double-buffered specs (costs only a little extra VMEM).
            self._single_buffer = False
            self._forward = self._build_forward(False)
            return self._forward(x, *self._flat_params)


def _reference_forward(model, x):
    """Plain-JAX reference mirroring the kernel's dtype pipeline."""
    cd = model.compute_dtype
    h = x.astype(jnp.float32)
    for (w, b), act in zip(model.params, model.activations):
        y = jnp.dot(h.astype(cd), w.astype(cd),
                    preferred_element_type=jnp.float32)
        y = y + b.astype(jnp.float32)
        if act == "sigmoid":
            y = jax.nn.sigmoid(y)
        elif act == "softmax":
            y = jax.nn.softmax(y, axis=1)
        h = y
    return h


if __name__ == "__main__":
    key = jax.random.PRNGKey(0)
    k_in, k_model, k_in2 = jax.random.split(key, 3)

    batch = 4
    in_features = 32
    out_features = [64, 16, 8]
    activations = ["sigmoid", None, "softmax"]

    x = jax.random.normal(k_in, (batch, in_features), jnp.float32)

    # f32-streamed weights (accuracy-debug mode).
    model = LinearActivationClassifier(
        in_features, out_features, activations, key=k_model,
        compute_dtype=jnp.float32)
    out = jax.block_until_ready(model(x))
    ref = _reference_forward(model, x)
    assert out.shape == (batch, out_features[-1])
    assert jnp.allclose(out, ref, atol=5e-3, rtol=5e-3), "f32 mismatch vs reference"

    # Multi-tile batch (2 grid steps -> exercises the parallel batch grid).
    x16 = jax.random.normal(k_in2, (16, in_features), jnp.float32)
    out16 = jax.block_until_ready(model(x16))
    ref16 = _reference_forward(model, x16)
    assert out16.shape == (16, out_features[-1])
    assert jnp.allclose(out16, ref16, atol=5e-3, rtol=5e-3), "multi-tile mismatch"

    # bf16-streamed weights/activations with f32 MXU accumulation (default,
    # high-throughput configuration for v5e/v6e/v7x).
    model_bf16 = LinearActivationClassifier(
        in_features, out_features, activations, key=k_model,
        compute_dtype=jnp.bfloat16)
    out_bf16 = jax.block_until_ready(model_bf16(x))
    ref_bf16 = _reference_forward(model_bf16, x)
    assert out_bf16.shape == (batch, out_features[-1])
    assert jnp.allclose(out_bf16, ref_bf16, atol=3e-2, rtol=3e-2), \
        "bf16 mismatch vs reference"

    print("KERNEL_OK")
</pallas_src>

<mosaic_0001>
module attributes {stable_mosaic.version = 11 : i64} {
  func.func @_fused_stack_kernel(%arg0: i32, %arg1: memref<4x32xf32, #tpu.memory_space<vmem>>, %arg2: memref<32x128xf32, #tpu.memory_space<vmem>>, %arg3: memref<1x128xf32, #tpu.memory_space<vmem>>, %arg4: memref<128x128xf32, #tpu.memory_space<vmem>>, %arg5: memref<1x128xf32, #tpu.memory_space<vmem>>, %arg6: memref<128x128xf32, #tpu.memory_space<vmem>>, %arg7: memref<1x128xf32, #tpu.memory_space<vmem>>, %arg8: memref<4x128xf32, #tpu.memory_space<vmem>>) attributes {dimension_semantics = [#tpu.dimension_semantics<parallel>], iteration_bounds = array<i64: 1>, scalar_prefetch = 0 : i64, scratch_operands = 0 : i64, tpu.core_type = #tpu.core_type<tc>, window_params = [{transform_indices = @transform_0, window_bounds = array<i64: 4, 32>}, {pipeline_mode = #tpu.pipeline_mode<synchronous>, transform_indices = @transform_1, window_bounds = array<i64: 32, 128>}, {pipeline_mode = #tpu.pipeline_mode<synchronous>, transform_indices = @transform_2, window_bounds = array<i64: 1, 128>}, {pipeline_mode = #tpu.pipeline_mode<synchronous>, transform_indices = @transform_3, window_bounds = array<i64: 128, 128>}, {pipeline_mode = #tpu.pipeline_mode<synchronous>, transform_indices = @transform_4, window_bounds = array<i64: 1, 128>}, {pipeline_mode = #tpu.pipeline_mode<synchronous>, transform_indices = @transform_5, window_bounds = array<i64: 128, 128>}, {pipeline_mode = #tpu.pipeline_mode<synchronous>, transform_indices = @transform_6, window_bounds = array<i64: 1, 128>}, {transform_indices = @transform_7, window_bounds = array<i64: 4, 128>}]} {
    %c0 = arith.constant 0 : index
    %c0_0 = arith.constant 0 : index
    %0 = vector.load %arg1[%c0, %c0_0] : memref<4x32xf32, #tpu.memory_space<vmem>>, vector<4x32xf32>
    %c0_1 = arith.constant 0 : index
    %c0_2 = arith.constant 0 : index
    %1 = vector.load %arg2[%c0_1, %c0_2] : memref<32x128xf32, #tpu.memory_space<vmem>>, vector<32x128xf32>
    %c0_3 = arith.constant 0 : index
    %c0_4 = arith.constant 0 : index
    %2 = vector.load %arg3[%c0_3, %c0_4] : memref<1x128xf32, #tpu.memory_space<vmem>>, vector<1x128xf32>
    %cst = arith.constant dense<0.000000e+00> : vector<4x128xf32>
    %3 = tpu.matmul %0, %1, %cst {dimension_numbers = #tpu.dot_dimension_numbers<[1], [0], [0], [1], [0, 0, 1, 1], [], []>} : vector<4x32xf32>, vector<32x128xf32>, vector<4x128xf32> -> vector<4x128xf32>
    %4 = vector.broadcast %2 : vector<1x128xf32> to vector<4x128xf32>
    %5 = arith.addf %3, %4 : vector<4x128xf32>
    %cst_5 = arith.constant 5.000000e-01 : f32
    %6 = vector.broadcast %cst_5 : f32 to vector<4x128xf32>
    %7 = arith.mulf %6, %5 : vector<4x128xf32>
    %8 = math.tanh %7 : vector<4x128xf32>
    %cst_6 = arith.constant 1.000000e+00 : f32
    %9 = vector.broadcast %cst_6 : f32 to vector<4x128xf32>
    %10 = arith.addf %9, %8 : vector<4x128xf32>
    %cst_7 = arith.constant 5.000000e-01 : f32
    %11 = vector.broadcast %cst_7 : f32 to vector<4x128xf32>
    %12 = arith.mulf %11, %10 : vector<4x128xf32>
    %c0_8 = arith.constant 0 : index
    %c0_9 = arith.constant 0 : index
    %13 = vector.load %arg4[%c0_8, %c0_9] : memref<128x128xf32, #tpu.memory_space<vmem>>, vector<128x128xf32>
    %c0_10 = arith.constant 0 : index
    %c0_11 = arith.constant 0 : index
    %14 = vector.load %arg5[%c0_10, %c0_11] : memref<1x128xf32, #tpu.memory_space<vmem>>, vector<1x128xf32>
    %cst_12 = arith.constant dense<0.000000e+00> : vector<4x128xf32>
    %15 = tpu.matmul %12, %13, %cst_12 {dimension_numbers = #tpu.dot_dimension_numbers<[1], [0], [0], [1], [0, 0, 1, 1], [], []>} : vector<4x128xf32>, vector<128x128xf32>, vector<4x128xf32> -> vector<4x128xf32>
    %16 = vector.broadcast %14 : vector<1x128xf32> to vector<4x128xf32>
    %17 = arith.addf %15, %16 : vector<4x128xf32>
    %c0_13 = arith.constant 0 : index
    %c0_14 = arith.constant 0 : index
    %18 = vector.load %arg6[%c0_13, %c0_14] : memref<128x128xf32, #tpu.memory_space<vmem>>, vector<128x128xf32>
    %c0_15 = arith.constant 0 : index
    %c0_16 = arith.constant 0 : index
    %19 = vector.load %arg7[%c0_15, %c0_16] : memref<1x128xf32, #tpu.memory_space<vmem>>, vector<1x128xf32>
    %cst_17 = arith.constant dense<0.000000e+00> : vector<4x128xf32>
    %20 = tpu.matmul %17, %18, %cst_17 {dimension_numbers = #tpu.dot_dimension_numbers<[1], [0], [0], [1], [0, 0, 1, 1], [], []>} : vector<4x128xf32>, vector<128x128xf32>, vector<4x128xf32> -> vector<4x128xf32>
    %21 = vector.broadcast %19 : vector<1x128xf32> to vector<4x128xf32>
    %22 = arith.addf %20, %21 : vector<4x128xf32>
    %cst_18 = arith.constant dense<0xFF800000> : vector<4xf32>
    %23 = vector.multi_reduction <maximumf>, %22, %cst_18 [1] : vector<4x128xf32> to vector<4xf32>
    %24 = vector.shape_cast %23 : vector<4xf32> to vector<4x1xf32>
    %25 = vector.broadcast %24 : vector<4x1xf32> to vector<4x128xf32>
    %26 = arith.subf %22, %25 : vector<4x128xf32>
    %27 = math.exp %26 : vector<4x128xf32>
    %cst_19 = arith.constant dense<0.000000e+00> : vector<4xf32>
    %28 = vector.multi_reduction <add>, %27, %cst_19 [1] : vector<4x128xf32> to vector<4xf32>
    %29 = vector.shape_cast %28 : vector<4xf32> to vector<4x1xf32>
    %30 = vector.broadcast %29 : vector<4x1xf32> to vector<4x128xf32>
    %31 = arith.divf %27, %30 : vector<4x128xf32>
    %c0_20 = arith.constant 0 : index
    %c0_21 = arith.constant 0 : index
    %32 = vector.load %arg8[%c0_20, %c0_21] : memref<4x128xf32, #tpu.memory_space<vmem>>, vector<4x128xf32>
    tpu.vector_store %arg8[%c0_20, %c0_21], %31 {strides = array<i32>} : memref<4x128xf32, #tpu.memory_space<vmem>>, vector<4x128xf32>,
    return
  }
  func.func @transform_0(%arg0: i32) -> (i32, i32) {
    %c0_i32 = arith.constant 0 : i32
    %c0_i32_0 = arith.constant 0 : i32
    return %arg0, %c0_i32 : i32, i32
  }
  func.func @transform_1(%arg0: i32) -> (i32, i32) {
    %c0_i32 = arith.constant 0 : i32
    %c0_i32_0 = arith.constant 0 : i32
    %c0_i32_1 = arith.constant 0 : i32
    return %c0_i32, %c0_i32_0 : i32, i32
  }
  func.func @transform_2(%arg0: i32) -> (i32, i32) {
    %c0_i32 = arith.constant 0 : i32
    %c0_i32_0 = arith.constant 0 : i32
    %c0_i32_1 = arith.constant 0 : i32
    return %c0_i32, %c0_i32_0 : i32, i32
  }
  func.func @transform_3(%arg0: i32) -> (i32, i32) {
    %c0_i32 = arith.constant 0 : i32
    %c0_i32_0 = arith.constant 0 : i32
    %c0_i32_1 = arith.constant 0 : i32
    return %c0_i32, %c0_i32_0 : i32, i32
  }
  func.func @transform_4(%arg0: i32) -> (i32, i32) {
    %c0_i32 = arith.constant 0 : i32
    %c0_i32_0 = arith.constant 0 : i32
    %c0_i32_1 = arith.constant 0 : i32
    return %c0_i32, %c0_i32_0 : i32, i32
  }
  func.func @transform_5(%arg0: i32) -> (i32, i32) {
    %c0_i32 = arith.constant 0 : i32
    %c0_i32_0 = arith.constant 0 : i32
    %c0_i32_1 = arith.constant 0 : i32
    return %c0_i32, %c0_i32_0 : i32, i32
  }
  func.func @transform_6(%arg0: i32) -> (i32, i32) {
    %c0_i32 = arith.constant 0 : i32
    %c0_i32_0 = arith.constant 0 : i32
    %c0_i32_1 = arith.constant 0 : i32
    return %c0_i32, %c0_i32_0 : i32, i32
  }
  func.func @transform_7(%arg0: i32) -> (i32, i32) {
    %c0_i32 = arith.constant 0 : i32
    %c0_i32_0 = arith.constant 0 : i32
    return %arg0, %c0_i32 : i32, i32
  }
}

module attributes {stable_mosaic.version = 11 : i64} {
  func.func @_fused_stack_kernel(%arg0: i32, %arg1: memref<4x32xf32, #tpu.memory_space<vmem>>, %arg2: memref<32x128xf32, #tpu.memory_space<vmem>>, %arg3: memref<1x128xf32, #tpu.memory_space<vmem>>, %arg4: memref<128x128xf32, #tpu.memory_space<vmem>>, %arg5: memref<1x128xf32, #tpu.memory_space<vmem>>, %arg6: memref<128x128xf32, #tpu.memory_space<vmem>>, %arg7: memref<1x128xf32, #tpu.memory_space<vmem>>, %arg8: memref<4x128xf32, #tpu.memory_space<vmem>>) attributes {dimension_semantics = [#tpu.dimension_semantics<parallel>], iteration_bounds = array<i64: 1>, scalar_prefetch = 0 : i64, scratch_operands = 0 : i64, tpu.core_type = #tpu.core_type<tc>, window_params = [{transform_indices = @transform_0, window_bounds = array<i64: 4, 32>}, {pipeline_mode = #tpu.pipeline_mode<synchronous>, transform_indices = @transform_1, window_bounds = array<i64: 32, 128>}, {pipeline_mode = #tpu.pipeline_mode<synchronous>, transform_indices = @transform_2, window_bounds = array<i64: 1, 128>}, {pipeline_mode = #tpu.pipeline_mode<synchronous>, transform_indices = @transform_3, window_bounds = array<i64: 128, 128>}, {pipeline_mode = #tpu.pipeline_mode<synchronous>, transform_indices = @transform_4, window_bounds = array<i64: 1, 128>}, {pipeline_mode = #tpu.pipeline_mode<synchronous>, transform_indices = @transform_5, window_bounds = array<i64: 128, 128>}, {pipeline_mode = #tpu.pipeline_mode<synchronous>, transform_indices = @transform_6, window_bounds = array<i64: 1, 128>}, {transform_indices = @transform_7, window_bounds = array<i64: 4, 128>}]} {
    %c0 = arith.constant 0 : index
    %c0_0 = arith.constant 0 : index
    %0 = vector.load %arg1[%c0, %c0_0] : memref<4x32xf32, #tpu.memory_space<vmem>>, vector<4x32xf32>
    %c0_1 = arith.constant 0 : index
    %c0_2 = arith.constant 0 : index
    %1 = vector.load %arg2[%c0_1, %c0_2] : memref<32x128xf32, #tpu.memory_space<vmem>>, vector<32x128xf32>
    %c0_3 = arith.constant 0 : index
    %c0_4 = arith.constant 0 : index
    %2 = vector.load %arg3[%c0_3, %c0_4] : memref<1x128xf32, #tpu.memory_space<vmem>>, vector<1x128xf32>
    %cst = arith.constant dense<0.000000e+00> : vector<4x128xf32>
    %3 = tpu.matmul %0, %1, %cst {dimension_numbers = #tpu.dot_dimension_numbers<[1], [0], [0], [1], [0, 0, 1, 1], [], []>} : vector<4x32xf32>, vector<32x128xf32>, vector<4x128xf32> -> vector<4x128xf32>
    %4 = vector.broadcast %2 : vector<1x128xf32> to vector<4x128xf32>
    %5 = arith.addf %3, %4 : vector<4x128xf32>
    %cst_5 = arith.constant 5.000000e-01 : f32
    %6 = vector.broadcast %cst_5 : f32 to vector<4x128xf32>
    %7 = arith.mulf %6, %5 : vector<4x128xf32>
    %8 = math.tanh %7 : vector<4x128xf32>
    %cst_6 = arith.constant 1.000000e+00 : f32
    %9 = vector.broadcast %cst_6 : f32 to vector<4x128xf32>
    %10 = arith.addf %9, %8 : vector<4x128xf32>
    %cst_7 = arith.constant 5.000000e-01 : f32
    %11 = vector.broadcast %cst_7 : f32 to vector<4x128xf32>
    %12 = arith.mulf %11, %10 : vector<4x128xf32>
    %c0_8 = arith.constant 0 : index
    %c0_9 = arith.constant 0 : index
    %13 = vector.load %arg4[%c0_8, %c0_9] : memref<128x128xf32, #tpu.memory_space<vmem>>, vector<128x128xf32>
    %c0_10 = arith.constant 0 : index
    %c0_11 = arith.constant 0 : index
    %14 = vector.load %arg5[%c0_10, %c0_11] : memref<1x128xf32, #tpu.memory_space<vmem>>, vector<1x128xf32>
    %cst_12 = arith.constant dense<0.000000e+00> : vector<4x128xf32>
    %15 = tpu.matmul %12, %13, %cst_12 {dimension_numbers = #tpu.dot_dimension_numbers<[1], [0], [0], [1], [0, 0, 1, 1], [], []>} : vector<4x128xf32>, vector<128x128xf32>, vector<4x128xf32> -> vector<4x128xf32>
    %16 = vector.broadcast %14 : vector<1x128xf32> to vector<4x128xf32>
    %17 = arith.addf %15, %16 : vector<4x128xf32>
    %c0_13 = arith.constant 0 : index
    %c0_14 = arith.constant 0 : index
    %18 = vector.load %arg6[%c0_13, %c0_14] : memref<128x128xf32, #tpu.memory_space<vmem>>, vector<128x128xf32>
    %c0_15 = arith.constant 0 : index
    %c0_16 = arith.constant 0 : index
    %19 = vector.load %arg7[%c0_15, %c0_16] : memref<1x128xf32, #tpu.memory_space<vmem>>, vector<1x128xf32>
    %cst_17 = arith.constant dense<0.000000e+00> : vector<4x128xf32>
    %20 = tpu.matmul %17, %18, %cst_17 {dimension_numbers = #tpu.dot_dimension_numbers<[1], [0], [0], [1], [0, 0, 1, 1], [], []>} : vector<4x128xf32>, vector<128x128xf32>, vector<4x128xf32> -> vector<4x128xf32>
    %21 = vector.broadcast %19 : vector<1x128xf32> to vector<4x128xf32>
    %22 = arith.addf %20, %21 : vector<4x128xf32>
    %cst_18 = arith.constant dense<0xFF800000> : vector<4xf32>
    %23 = vector.multi_reduction <maximumf>, %22, %cst_18 [1] : vector<4x128xf32> to vector<4xf32>
    %24 = vector.shape_cast %23 : vector<4xf32> to vector<4x1xf32>
    %25 = vector.broadcast %24 : vector<4x1xf32> to vector<4x128xf32>
    %26 = arith.subf %22, %25 : vector<4x128xf32>
    %27 = math.exp %26 : vector<4x128xf32>
    %cst_19 = arith.constant dense<0.000000e+00> : vector<4xf32>
    %28 = vector.multi_reduction <add>, %27, %cst_19 [1] : vector<4x128xf32> to vector<4xf32>
    %29 = vector.shape_cast %28 : vector<4xf32> to vector<4x1xf32>
    %30 = vector.broadcast %29 : vector<4x1xf32> to vector<4x128xf32>
    %31 = arith.divf %27, %30 : vector<4x128xf32>
    %c0_20 = arith.constant 0 : index
    %c0_21 = arith.constant 0 : index
    %32 = vector.load %arg8[%c0_20, %c0_21] : memref<4x128xf32, #tpu.memory_space<vmem>>, vector<4x128xf32>
    tpu.vector_store %arg8[%c0_20, %c0_21], %31 {strides = array<i32>} : memref<4x128xf32, #tpu.memory_space<vmem>>, vector<4x128xf32>,
    return
  }
  func.func @transform_0(%arg0: i32) -> (i32, i32) {
    %c0_i32 = arith.constant 0 : i32
    %c0_i32_0 = arith.constant 0 : i32
    return %arg0, %c0_i32 : i32, i32
  }
  func.func @transform_1(%arg0: i32) -> (i32, i32) {
    %c0_i32 = arith.constant 0 : i32
    %c0_i32_0 = arith.constant 0 : i32
    %c0_i32_1 = arith.constant 0 : i32
    return %c0_i32, %c0_i32_0 : i32, i32
  }
  func.func @transform_2(%arg0: i32) -> (i32, i32) {
    %c0_i32 = arith.constant 0 : i32
    %c0_i32_0 = arith.constant 0 : i32
    %c0_i32_1 = arith.constant 0 : i32
    return %c0_i32, %c0_i32_0 : i32, i32
  }
  func.func @transform_3(%arg0: i32) -> (i32, i32) {
    %c0_i32 = arith.constant 0 : i32
    %c0_i32_0 = arith.constant 0 : i32
    %c0_i32_1 = arith.constant 0 : i32
    return %c0_i32, %c0_i32_0 : i32, i32
  }
  func.func @transform_4(%arg0: i32) -> (i32, i32) {
    %c0_i32 = arith.constant 0 : i32
    %c0_i32_0 = arith.constant 0 : i32
    %c0_i32_1 = arith.constant 0 : i32
    return %c0_i32, %c0_i32_0 : i32, i32
  }
  func.func @transform_5(%arg0: i32) -> (i32, i32) {
    %c0_i32 = arith.constant 0 : i32
    %c0_i32_0 = arith.constant 0 : i32
    %c0_i32_1 = arith.constant 0 : i32
    return %c0_i32, %c0_i32_0 : i32, i32
  }
  func.func @transform_6(%arg0: i32) -> (i32, i32) {
    %c0_i32 = arith.constant 0 : i32
    %c0_i32_0 = arith.constant 0 : i32
    %c0_i32_1 = arith.constant 0 : i32
    return %c0_i32, %c0_i32_0 : i32, i32
  }
  func.func @transform_7(%arg0: i32) -> (i32, i32) {
    %c0_i32 = arith.constant 0 : i32
    %c0_i32_0 = arith.constant 0 : i32
    return %arg0, %c0_i32 : i32, i32
  }
}

</mosaic_0001>

<llo_original>
// kernel: fused_forward.1
$region0: #{fused_forward.1}
  #allocation0 [shape = 'u32[]', space=smem, size = 0x4, offset = 0x4, fixed_abs, tag = 'smem constant byte address 0x4 - core index']
  #allocation1 [shape = 'u32[144,128]{1,0:T(1,128)}', space=vmem, size = 0x12000, scoped, tag = 'internal scratch']
  %s0 = inlined_call_operand.hbm [shape: f32[4,32], index: 0, kind: input, shape index: {}]
  %s1 = inlined_call_operand.hbm [shape: f32[32,128], index: 1, kind: input, shape index: {}]
  %s2 = inlined_call_operand.vmem [shape: f32[1,128], index: 2, kind: input, shape index: {}]
  %s3 = inlined_call_operand.hbm [shape: f32[128,128], index: 3, kind: input, shape index: {}]
  %s4 = inlined_call_operand.vmem [shape: f32[1,128], index: 4, kind: input, shape index: {}]
  %s5 = inlined_call_operand.hbm [shape: f32[128,128], index: 5, kind: input, shape index: {}]
  %s6 = inlined_call_operand.vmem [shape: f32[1,128], index: 6, kind: input, shape index: {}]
  %s7 = inlined_call_operand.hbm [shape: f32[4,128], index: 7, kind: output, shape index: {}]
  %s8 = sld [smem:[#allocation0]]
  $region54: #{fused_forward.1} parent=0
    _
  %s10 = ssub.s32 1, %s8
  %s11 = scalar_select 0, %s10, %s8
  $region1: #{fused_forward.1} parent=0
    #allocation2 [shape = 'u8[2048]{0}', space=vmem, size = 0x800, scoped, tag = 'input window, operand 0, single buffered']
    #allocation3 [shape = 's32[1]{0}', space=sflag, size = 0x4, scoped, tag = 'scoped memory for fused_forward.1']
    #allocation4 [shape = 's32[1]{0}', space=sflag, size = 0x4, scoped, tag = 'scoped memory for fused_forward.1']
    #allocation5 [shape = 'u8[16384]{0}', space=vmem, size = 0x4000, scoped, tag = 'input window, operand 1, single buffered']
    #allocation6 [shape = 's32[1]{0}', space=sflag, size = 0x4, scoped, tag = 'scoped memory for fused_forward.1']
    #allocation7 [shape = 'u8[65536]{0}', space=vmem, size = 0x10000, scoped, tag = 'input window, operand 3, single buffered']
    #allocation8 [shape = 'u8[65536]{0}', space=vmem, size = 0x10000, scoped, tag = 'input window, operand 5, single buffered']
    #allocation9 [shape = 's32[1]{0}', space=sflag, size = 0x4, scoped, tag = 'scoped memory for fused_forward.1']
    #allocation10 [shape = 'u8[2048]{0}', space=vmem, size = 0x800, scoped, tag = 'output window, operand 0, single buffered']
    %12 = vsyncpa [#allocation3], 0
    %13 = vsyncpa [#allocation6], 0
    %14 = vsyncpa [#allocation9], 0
    %15 = vsyncpa [#allocation4], 0
    // Predicated region
    $region2: #{fused_forward.1} parent=1 // pred_check
      _
    $region3: #{fused_forward.1} parent=1 // pred_check_branch
      %17 = sbr.rel (0) target = $region5
    $region4: #{fused_forward.1} parent=1 // pred_region
      %s19 = ssub.s32 64, 64
      %20 = vsyncadd [#allocation3], %s19
      %s22 = sshll.u32 [#allocation2], 4
      %s23 = int_to_ptr.vmem [resolvable:$true] %s22
      %25 = dma.hbm_to_vmem [thread:$0]  %s0, 64, %s23, [#allocation3]
    $region5: #{fused_forward.1} parent=1 // pred_fallthru
      _
    // Predicated region
    $region6: #{fused_forward.1} parent=1 // pred_check
      _
    $region7: #{fused_forward.1} parent=1 // pred_check_branch
      %27 = sbr.rel (0) target = $region9
    $region8: #{fused_forward.1} parent=1 // pred_region
      %s29 = ssub.s32 512, 512
      %30 = vsyncadd [#allocation6], %s29
      %s31 = sshll.u32 [#allocation5], 4
      %s32 = int_to_ptr.vmem [resolvable:$true] %s31
      %37 = dma.hbm_to_vmem [thread:$0]  %s1, 512, %s32, [#allocation6], 128, 128, 8
    $region9: #{fused_forward.1} parent=1 // pred_fallthru
      _
    // Predicated region
    $region10: #{fused_forward.1} parent=1 // pred_check
      _
    $region11: #{fused_forward.1} parent=1 // pred_check_branch
      %39 = sbr.rel (0) target = $region13
    $region12: #{fused_forward.1} parent=1 // pred_region
      _
    $region13: #{fused_forward.1} parent=1 // pred_fallthru
      _
    // Predicated region
    $region14: #{fused_forward.1} parent=1 // pred_check
      _
    $region15: #{fused_forward.1} parent=1 // pred_check_branch
      %41 = sbr.rel (0) target = $region17
    $region16: #{fused_forward.1} parent=1 // pred_region
      %s43 = ssub.s32 2048, 2048
      %44 = vsyncadd [#allocation6], %s43
      %s45 = sshll.u32 [#allocation7], 4
      %s46 = int_to_ptr.vmem [resolvable:$true] %s45
      %51 = dma.hbm_to_vmem [thread:$0]  %s3, 2048, %s46, [#allocation6], 128, 128, 8
    $region17: #{fused_forward.1} parent=1 // pred_fallthru
      _
    // Predicated region
    $region18: #{fused_forward.1} parent=1 // pred_check
      _
    $region19: #{fused_forward.1} parent=1 // pred_check_branch
      %53 = sbr.rel (0) target = $region21
    $region20: #{fused_forward.1} parent=1 // pred_region
      _
    $region21: #{fused_forward.1} parent=1 // pred_fallthru
      _
    // Predicated region
    $region22: #{fused_forward.1} parent=1 // pred_check
      _
    $region23: #{fused_forward.1} parent=1 // pred_check_branch
      %55 = sbr.rel (0) target = $region25
    $region24: #{fused_forward.1} parent=1 // pred_region
      %s57 = ssub.s32 2048, 2048
      %58 = vsyncadd [#allocation9], %s57
      %s59 = sshll.u32 [#allocation8], 4
      %s60 = int_to_ptr.vmem [resolvable:$true] %s59
      %65 = dma.hbm_to_vmem [thread:$0]  %s5, 2048, %s60, [#allocation9], 128, 128, 8
    $region25: #{fused_forward.1} parent=1 // pred_fallthru
      _
    // Predicated region
    $region26: #{fused_forward.1} parent=1 // pred_check
      _
    $region27: #{fused_forward.1} parent=1 // pred_check_branch
      %67 = sbr.rel (0) target = $region29
    $region28: #{fused_forward.1} parent=1 // pred_region
      _
    $region29: #{fused_forward.1} parent=1 // pred_fallthru
      _
    // Predicated region
    $region30: #{fused_forward.1} parent=1 // pred_check
      _
    $region31: #{fused_forward.1} parent=1 // pred_check_branch
      %69 = sbr.rel (0) target = $region33
    $region32: #{fused_forward.1} parent=1 // pred_region
      %70 = dma.done [#allocation3], 64
    $region33: #{fused_forward.1} parent=1 // pred_fallthru
      _
    // Predicated region
    $region34: #{fused_forward.1} parent=1 // pred_check
      _
    $region35: #{fused_forward.1} parent=1 // pred_check_branch
      %72 = sbr.rel (0) target = $region37
    $region36: #{fused_forward.1} parent=1 // pred_region
      %73 = dma.done [#allocation6], 512
    $region37: #{fused_forward.1} parent=1 // pred_fallthru
      _
    // Predicated region
    $region38: #{fused_forward.1} parent=1 // pred_check
      _
    $region39: #{fused_forward.1} parent=1 // pred_check_branch
      %75 = sbr.rel (0) target = $region41
    $region40: #{fused_forward.1} parent=1 // pred_region
      %76 = dma.done [#allocation6], 2048
    $region41: #{fused_forward.1} parent=1 // pred_fallthru
      _
    // Predicated region
    $region42: #{fused_forward.1} parent=1 // pred_check
      _
    $region43: #{fused_forward.1} parent=1 // pred_check_branch
      %78 = sbr.rel (0) target = $region45
    $region44: #{fused_forward.1} parent=1 // pred_region
      %79 = dma.done [#allocation9], 2048
    $region45: #{fused_forward.1} parent=1 // pred_fallthru
      _
    %v80 = vld [vmem:[#allocation2] sm:$0xf]
    %v81 = vld [vmem:[#allocation5] sm:$0xff]
    %v82 = vld [vmem:[#allocation5 + $0x8] sm:$0xff]
    %v83 = vld [vmem:[#allocation5 + $0x10] sm:$0xff]
    %v84 = vld [vmem:[#allocation5 + $0x18] sm:$0xff]
    %v85 = vld [vmem:[%s2] sm:$0x1]
    %v87 = vlaneseq
    %v88 = vshrl.u32 %v87, 7
    %v89 = vsub.s32 0, %v88
    %v90 = vrot.slane %v85, %v89
    %vm92 = vcmask 261120
    %v94 = vsel %vm92, %v80, 0
    %96 = vmatprep.subr.mxu0 0.0
    %97 = vmatpush1.msra.mxu0 %v81
    %98 = vmatprep.subr.mxu0 0.0
    %99 = vmatpush1.msra.mxu0 %v82
    %100 = vmatprep.subr.mxu0 0.0
    %101 = vmatpush1.msra.mxu0 %v83
    %102 = vmatprep.subr.mxu0 0.0
    %103 = vmatpush1.msra.mxu0 %v84
    %104 = vmatprep.subr.mxu0 0.0
    %105 = vmatpush1.msra.mxu0 0.0
    %106 = vmatprep.subr.mxu0 0.0
    %107 = vmatpush1.msra.mxu0 0.0
    %108 = vmatprep.subr.mxu0 0.0
    %109 = vmatpush1.msra.mxu0 0.0
    %110 = vmatprep.subr.mxu0 0.0
    %111 = vmatpush1.msra.mxu0 0.0
    %112 = vmatprep.subr.mxu0 0.0
    %113 = vmatpush1.msra.mxu0 0.0
    %114 = vmatprep.subr.mxu0 0.0
    %115 = vmatpush1.msra.mxu0 0.0
    %116 = vmatprep.subr.mxu0 0.0
    %117 = vmatpush1.msra.mxu0 0.0
    %118 = vmatprep.subr.mxu0 0.0
    %119 = vmatpush1.msra.mxu0 0.0
    %120 = vmatprep.subr.mxu0 0.0
    %121 = vmatpush1.msra.mxu0 0.0
    %122 = vmatprep.subr.mxu0 0.0
    %123 = vmatpush1.msra.mxu0 0.0
    %124 = vmatprep.subr.mxu0 0.0
    %125 = vmatpush1.msra.mxu0 0.0
    %126 = vmatprep.subr.mxu0 0.0
    %127 = vmatpush1.msra.mxu0 0.0
    %128 = vmatprep.subr.mxu0 0.0
    %129 = vmatpush1.msra.mxu0 0.0
    %130 = vmatprep.subr.mxu0 0.0
    %131 = vmatpush1.msra.mxu0 0.0
    %132 = vmatprep.subr.mxu0 0.0
    %133 = vmatpush1.msra.mxu0 0.0
    %134 = vmatprep.subr.mxu0 0.0
    %135 = vmatpush1.msra.mxu0 0.0
    %136 = vmatprep.subr.mxu0 0.0
    %137 = vmatpush1.msra.mxu0 0.0
    %138 = vmatprep.subr.mxu0 0.0
    %139 = vmatpush1.msra.mxu0 0.0
    %140 = vmatprep.subr.mxu0 0.0
    %141 = vmatpush1.msra.mxu0 0.0
    %142 = vmatprep.subr.mxu0 0.0
    %143 = vmatpush1.msra.mxu0 0.0
    %144 = vmatprep.subr.mxu0 0.0
    %145 = vmatpush1.msra.mxu0 0.0
    %146 = vmatprep.subr.mxu0 0.0
    %147 = vmatpush1.msra.mxu0 0.0
    %148 = vmatprep.subr.mxu0 0.0
    %149 = vmatpush1.msra.mxu0 0.0
    %150 = vmatprep.subr.mxu0 0.0
    %151 = vmatpush1.msra.mxu0 0.0
    %152 = vmatprep.subr.mxu0 0.0
    %153 = vmatpush1.msra.mxu0 0.0
    %154 = vmatprep.subr.mxu0 0.0
    %155 = vmatpush1.msra.mxu0 0.0
    %156 = vmatprep.subr.mxu0 0.0
    %157 = vmatpush1.msra.mxu0 0.0
    %158 = vmatprep.subr.mxu0 0.0
    %159 = vmatpush1.msra.mxu0 0.0
    %160 = vmatprep.mubr.f32.mxu0 0.0
    %161 = vmatmul.mubr.f32.gmra.mrb[0].mxu0 %v94
    %v162 = vpop.f32.mrb[0].mxu0
    %v163 = vadd.f32 %v90, %v162
    %v164 = vpop.f32.mrb[0].mxu0
    %165 = vdwg.mxu0
    %v166 = vmul.f32 %v163, 0.5
    %v167 = vtanh.pop %v166
    %v168 = vadd.f32 %v167, 1.0
    %v169 = vmul.f32 %v168, 0.5
    %v170 = vld [vmem:[#allocation7] sm:$0xff]
    %v171 = vld [vmem:[#allocation7 + $0x8] sm:$0xff]
    %v172 = vld [vmem:[#allocation7 + $0x10] sm:$0xff]
    %v173 = vld [vmem:[#allocation7 + $0x18] sm:$0xff]
    %v174 = vld [vmem:[#allocation7 + $0x20] sm:$0xff]
    %v175 = vld [vmem:[#allocation7 + $0x28] sm:$0xff]
    %v176 = vld [vmem:[#allocation7 + $0x30] sm:$0xff]
    %v177 = vld [vmem:[#allocation7 + $0x38] sm:$0xff]
    %v178 = vld [vmem:[#allocation7 + $0x40] sm:$0xff]
    %v179 = vld [vmem:[#allocation7 + $0x48] sm:$0xff]
    %v180 = vld [vmem:[#allocation7 + $0x50] sm:$0xff]
    %v181 = vld [vmem:[#allocation7 + $0x58] sm:$0xff]
    %v182 = vld [vmem:[#allocation7 + $0x60] sm:$0xff]
    %v183 = vld [vmem:[#allocation7 + $0x68] sm:$0xff]
    %v184 = vld [vmem:[#allocation7 + $0x70] sm:$0xff]
    %v185 = vld [vmem:[#allocation7 + $0x78] sm:$0xff]
    %v186 = vld [vmem:[%s4] sm:$0x1]
    %v188 = vlaneseq
    %v189 = vshrl.u32 %v188, 7
    %v190 = vsub.s32 0, %v189
    %v191 = vrot.slane %v186, %v190
    %193 = vmatprep.subr.mxu0 0.0
    %194 = vmatpush1.msra.mxu0 %v170
    %195 = vmatprep.subr.mxu0 0.0
    %196 = vmatpush1.msra.mxu0 %v171
    %197 = vmatprep.subr.mxu0 0.0
    %198 = vmatpush1.msra.mxu0 %v172
    %199 = vmatprep.subr.mxu0 0.0
    %200 = vmatpush1.msra.mxu0 %v173
    %201 = vmatprep.subr.mxu0 0.0
    %202 = vmatpush1.msra.mxu0 %v174
    %203 = vmatprep.subr.mxu0 0.0
    %204 = vmatpush1.msra.mxu0 %v175
    %205 = vmatprep.subr.mxu0 0.0
    %206 = vmatpush1.msra.mxu0 %v176
    %207 = vmatprep.subr.mxu0 0.0
    %208 = vmatpush1.msra.mxu0 %v177
    %209 = vmatprep.subr.mxu0 0.0
    %210 = vmatpush1.msra.mxu0 %v178
    %211 = vmatprep.subr.mxu0 0.0
    %212 = vmatpush1.msra.mxu0 %v179
    %213 = vmatprep.subr.mxu0 0.0
    %214 = vmatpush1.msra.mxu0 %v180
    %215 = vmatprep.subr.mxu0 0.0
    %216 = vmatpush1.msra.mxu0 %v181
    %217 = vmatprep.subr.mxu0 0.0
    %218 = vmatpush1.msra.mxu0 %v182
    %219 = vmatprep.subr.mxu0 0.0
    %220 = vmatpush1.msra.mxu0 %v183
    %221 = vmatprep.subr.mxu0 0.0
    %222 = vmatpush1.msra.mxu0 %v184
    %223 = vmatprep.subr.mxu0 0.0
    %224 = vmatpush1.msra.mxu0 %v185
    %225 = vmatprep.subr.mxu0 0.0
    %226 = vmatpush1.msra.mxu0 0.0
    %227 = vmatprep.subr.mxu0 0.0
    %228 = vmatpush1.msra.mxu0 0.0
    %229 = vmatprep.subr.mxu0 0.0
    %230 = vmatpush1.msra.mxu0 0.0
    %231 = vmatprep.subr.mxu0 0.0
    %232 = vmatpush1.msra.mxu0 0.0
    %233 = vmatprep.subr.mxu0 0.0
    %234 = vmatpush1.msra.mxu0 0.0
    %235 = vmatprep.subr.mxu0 0.0
    %236 = vmatpush1.msra.mxu0 0.0
    %237 = vmatprep.subr.mxu0 0.0
    %238 = vmatpush1.msra.mxu0 0.0
    %239 = vmatprep.subr.mxu0 0.0
    %240 = vmatpush1.msra.mxu0 0.0
    %241 = vmatprep.subr.mxu0 0.0
    %242 = vmatpush1.msra.mxu0 0.0
    %243 = vmatprep.subr.mxu0 0.0
    %244 = vmatpush1.msra.mxu0 0.0
    %245 = vmatprep.subr.mxu0 0.0
    %246 = vmatpush1.msra.mxu0 0.0
    %247 = vmatprep.subr.mxu0 0.0
    %248 = vmatpush1.msra.mxu0 0.0
    %249 = vmatprep.subr.mxu0 0.0
    %250 = vmatpush1.msra.mxu0 0.0
    %251 = vmatprep.subr.mxu0 0.0
    %252 = vmatpush1.msra.mxu0 0.0
    %253 = vmatprep.subr.mxu0 0.0
    %254 = vmatpush1.msra.mxu0 0.0
    %255 = vmatprep.subr.mxu0 0.0
    %256 = vmatpush1.msra.mxu0 0.0
    %257 = vmatprep.mubr.f32.mxu0 0.0
    %258 = vmatmul.mubr.f32.gmra.mrb[0].mxu0 %v169
    %v259 = vpop.f32.mrb[0].mxu0
    %v260 = vadd.f32 %v191, %v259
    %v261 = vpop.f32.mrb[0].mxu0
    %262 = vdwg.mxu0
    %v263 = vld [vmem:[#allocation8] sm:$0xff]
    %v264 = vld [vmem:[#allocation8 + $0x8] sm:$0xff]
    %v265 = vld [vmem:[#allocation8 + $0x10] sm:$0xff]
    %v266 = vld [vmem:[#allocation8 + $0x18] sm:$0xff]
    %v267 = vld [vmem:[#allocation8 + $0x20] sm:$0xff]
    %v268 = vld [vmem:[#allocation8 + $0x28] sm:$0xff]
    %v269 = vld [vmem:[#allocation8 + $0x30] sm:$0xff]
    %v270 = vld [vmem:[#allocation8 + $0x38] sm:$0xff]
    %v271 = vld [vmem:[#allocation8 + $0x40] sm:$0xff]
    %v272 = vld [vmem:[#allocation8 + $0x48] sm:$0xff]
    %v273 = vld [vmem:[#allocation8 + $0x50] sm:$0xff]
    %v274 = vld [vmem:[#allocation8 + $0x58] sm:$0xff]
    %v275 = vld [vmem:[#allocation8 + $0x60] sm:$0xff]
    %v276 = vld [vmem:[#allocation8 + $0x68] sm:$0xff]
    %v277 = vld [vmem:[#allocation8 + $0x70] sm:$0xff]
    %v278 = vld [vmem:[#allocation8 + $0x78] sm:$0xff]
    %v279 = vld [vmem:[%s6] sm:$0x1]
    %v281 = vlaneseq
    %v282 = vshrl.u32 %v281, 7
    %v283 = vsub.s32 0, %v282
    %v284 = vrot.slane %v279, %v283
    %286 = vmatprep.subr.mxu0 0.0
    %287 = vmatpush1.msra.mxu0 %v263
    %288 = vmatprep.subr.mxu0 0.0
    %289 = vmatpush1.msra.mxu0 %v264
    %290 = vmatprep.subr.mxu0 0.0
    %291 = vmatpush1.msra.mxu0 %v265
    %292 = vmatprep.subr.mxu0 0.0
    %293 = vmatpush1.msra.mxu0 %v266
    %294 = vmatprep.subr.mxu0 0.0
    %295 = vmatpush1.msra.mxu0 %v267
    %296 = vmatprep.subr.mxu0 0.0
    %297 = vmatpush1.msra.mxu0 %v268
    %298 = vmatprep.subr.mxu0 0.0
    %299 = vmatpush1.msra.mxu0 %v269
    %300 = vmatprep.subr.mxu0 0.0
    %301 = vmatpush1.msra.mxu0 %v270
    %302 = vmatprep.subr.mxu0 0.0
    %303 = vmatpush1.msra.mxu0 %v271
    %304 = vmatprep.subr.mxu0 0.0
    %305 = vmatpush1.msra.mxu0 %v272
    %306 = vmatprep.subr.mxu0 0.0
    %307 = vmatpush1.msra.mxu0 %v273
    %308 = vmatprep.subr.mxu0 0.0
    %309 = vmatpush1.msra.mxu0 %v274
    %310 = vmatprep.subr.mxu0 0.0
    %311 = vmatpush1.msra.mxu0 %v275
    %312 = vmatprep.subr.mxu0 0.0
    %313 = vmatpush1.msra.mxu0 %v276
    %314 = vmatprep.subr.mxu0 0.0
    %315 = vmatpush1.msra.mxu0 %v277
    %316 = vmatprep.subr.mxu0 0.0
    %317 = vmatpush1.msra.mxu0 %v278
    %318 = vmatprep.subr.mxu0 0.0
    %319 = vmatpush1.msra.mxu0 0.0
    %320 = vmatprep.subr.mxu0 0.0
    %321 = vmatpush1.msra.mxu0 0.0
    %322 = vmatprep.subr.mxu0 0.0
    %323 = vmatpush1.msra.mxu0 0.0
    %324 = vmatprep.subr.mxu0 0.0
    %325 = vmatpush1.msra.mxu0 0.0
    %326 = vmatprep.subr.mxu0 0.0
    %327 = vmatpush1.msra.mxu0 0.0
    %328 = vmatprep.subr.mxu0 0.0
    %329 = vmatpush1.msra.mxu0 0.0
    %330 = vmatprep.subr.mxu0 0.0
    %331 = vmatpush1.msra.mxu0 0.0
    %332 = vmatprep.subr.mxu0 0.0
    %333 = vmatpush1.msra.mxu0 0.0
    %334 = vmatprep.subr.mxu0 0.0
    %335 = vmatpush1.msra.mxu0 0.0
    %336 = vmatprep.subr.mxu0 0.0
    %337 = vmatpush1.msra.mxu0 0.0
    %338 = vmatprep.subr.mxu0 0.0
    %339 = vmatpush1.msra.mxu0 0.0
    %340 = vmatprep.subr.mxu0 0.0
    %341 = vmatpush1.msra.mxu0 0.0
    %342 = vmatprep.subr.mxu0 0.0
    %343 = vmatpush1.msra.mxu0 0.0
    %344 = vmatprep.subr.mxu0 0.0
    %345 = vmatpush1.msra.mxu0 0.0
    %346 = vmatprep.subr.mxu0 0.0
    %347 = vmatpush1.msra.mxu0 0.0
    %348 = vmatprep.subr.mxu0 0.0
    %349 = vmatpush1.msra.mxu0 0.0
    %350 = vmatprep.mubr.f32.mxu0 0.0
    %351 = vmatmul.mubr.f32.gmra.mrb[0].mxu0 %v260
    %v352 = vpop.f32.mrb[0].mxu0
    %v353 = vadd.f32 %v284, %v352
    %v354 = vpop.f32.mrb[0].mxu0
    %355 = vdwg.mxu0
    %vm356 = vcmask 1043456
    %v357 = vsel %vm356, %v353, -inf
    %358 = vmax.xlane.f32.xlu0 %v357
    %v359 = vpop.xlane.xlu0 %358
    %v360 = vsub.f32 %v353, %v359
    %v361 = vmul.f32 %v360, 1.442695
    %v362 = vpow.pop %v361
    %v363 = vsel %vm356, %v362, 0.0
    %364 = vadd.xlane.f32.xlu0 %v363
    %v365 = vpop.xlane.xlu0 %364
    %v366 = vrcp.pop %v365
    %v367 = vmul.f32 %v362, %v366
    %368 = vst [vmem:[#allocation10] sm:$0xf] %v367
    // Predicated region
    $region46: #{fused_forward.1} parent=1 // pred_check
      _
    $region47: #{fused_forward.1} parent=1 // pred_check_branch
      %370 = sbr.rel (0) target = $region49
    $region48: #{fused_forward.1} parent=1 // pred_region
      %s372 = ssub.s32 64, 64
      %373 = vsyncadd [#allocation4], %s372
      %s375 = sshll.u32 [#allocation10], 4
      %s376 = int_to_ptr.vmem [resolvable:$true] %s375
      %378 = dma.vmem_to_hbm [thread:$0]  %s376, 64, %s7, [#allocation4]
    $region49: #{fused_forward.1} parent=1 // pred_fallthru
      _
    // Predicated region
    $region50: #{fused_forward.1} parent=1 // pred_check
      _
    $region51: #{fused_forward.1} parent=1 // pred_check_branch
      %380 = sbr.rel (0) target = $region53
    $region52: #{fused_forward.1} parent=1 // pred_region
      %381 = dma.done [#allocation4], 64
    $region53: #{fused_forward.1} parent=1 // pred_fallthru
      _
    %382 = vsyncpa [#allocation3], 1
    %383 = vsyncpa [#allocation6], 1
    %384 = vsyncpa [#allocation9], 1
    %385 = vsyncpa [#allocation4], 1

// kernel: fused_forward.1
$region0: #{fused_forward.1}
  #allocation0 [shape = 'u32[]', space=smem, size = 0x4, offset = 0x4, fixed_abs, tag = 'smem constant byte address 0x4 - core index']
  #allocation1 [shape = 'u32[144,128]{1,0:T(1,128)}', space=vmem, size = 0x12000, scoped, tag = 'internal scratch']
  %s0 = inlined_call_operand.hbm [shape: f32[4,32], index: 0, kind: input, shape index: {}]
  %s1 = inlined_call_operand.hbm [shape: f32[32,128], index: 1, kind: input, shape index: {}]
  %s2 = inlined_call_operand.vmem [shape: f32[1,128], index: 2, kind: input, shape index: {}]
  %s3 = inlined_call_operand.hbm [shape: f32[128,128], index: 3, kind: input, shape index: {}]
  %s4 = inlined_call_operand.vmem [shape: f32[1,128], index: 4, kind: input, shape index: {}]
  %s5 = inlined_call_operand.hbm [shape: f32[128,128], index: 5, kind: input, shape index: {}]
  %s6 = inlined_call_operand.vmem [shape: f32[1,128], index: 6, kind: input, shape index: {}]
  %s7 = inlined_call_operand.hbm [shape: f32[4,128], index: 7, kind: output, shape index: {}]
  %s8 = sld [smem:[#allocation0]]
  $region54: #{fused_forward.1} parent=0
    _
  %s10 = ssub.s32 1, %s8
  %s11 = scalar_select 0, %s10, %s8
  $region1: #{fused_forward.1} parent=0
    #allocation2 [shape = 'u8[2048]{0}', space=vmem, size = 0x800, scoped, tag = 'input window, operand 0, single buffered']
    #allocation3 [shape = 's32[1]{0}', space=sflag, size = 0x4, scoped, tag = 'scoped memory for fused_forward.1']
    #allocation4 [shape = 's32[1]{0}', space=sflag, size = 0x4, scoped, tag = 'scoped memory for fused_forward.1']
    #allocation5 [shape = 'u8[16384]{0}', space=vmem, size = 0x4000, scoped, tag = 'input window, operand 1, single buffered']
    #allocation6 [shape = 's32[1]{0}', space=sflag, size = 0x4, scoped, tag = 'scoped memory for fused_forward.1']
    #allocation7 [shape = 'u8[65536]{0}', space=vmem, size = 0x10000, scoped, tag = 'input window, operand 3, single buffered']
    #allocation8 [shape = 'u8[65536]{0}', space=vmem, size = 0x10000, scoped, tag = 'input window, operand 5, single buffered']
    #allocation9 [shape = 's32[1]{0}', space=sflag, size = 0x4, scoped, tag = 'scoped memory for fused_forward.1']
    #allocation10 [shape = 'u8[2048]{0}', space=vmem, size = 0x800, scoped, tag = 'output window, operand 0, single buffered']
    %12 = vsyncpa [#allocation3], 0
    %13 = vsyncpa [#allocation6], 0
    %14 = vsyncpa [#allocation9], 0
    %15 = vsyncpa [#allocation4], 0
    // Predicated region
    $region2: #{fused_forward.1} parent=1 // pred_check
      _
    $region3: #{fused_forward.1} parent=1 // pred_check_branch
      %17 = sbr.rel (0) target = $region5
    $region4: #{fused_forward.1} parent=1 // pred_region
      %s19 = ssub.s32 64, 64
      %20 = vsyncadd [#allocation3], %s19
      %s22 = sshll.u32 [#allocation2], 4
      %s23 = int_to_ptr.vmem [resolvable:$true] %s22
      %25 = dma.hbm_to_vmem [thread:$0]  %s0, 64, %s23, [#allocation3]
    $region5: #{fused_forward.1} parent=1 // pred_fallthru
      _
    // Predicated region
    $region6: #{fused_forward.1} parent=1 // pred_check
      _
    $region7: #{fused_forward.1} parent=1 // pred_check_branch
      %27 = sbr.rel (0) target = $region9
    $region8: #{fused_forward.1} parent=1 // pred_region
      %s29 = ssub.s32 512, 512
      %30 = vsyncadd [#allocation6], %s29
      %s31 = sshll.u32 [#allocation5], 4
      %s32 = int_to_ptr.vmem [resolvable:$true] %s31
      %37 = dma.hbm_to_vmem [thread:$0]  %s1, 512, %s32, [#allocation6], 128, 128, 8
    $region9: #{fused_forward.1} parent=1 // pred_fallthru
      _
    // Predicated region
    $region10: #{fused_forward.1} parent=1 // pred_check
      _
    $region11: #{fused_forward.1} parent=1 // pred_check_branch
      %39 = sbr.rel (0) target = $region13
    $region12: #{fused_forward.1} parent=1 // pred_region
      _
    $region13: #{fused_forward.1} parent=1 // pred_fallthru
      _
    // Predicated region
    $region14: #{fused_forward.1} parent=1 // pred_check
      _
    $region15: #{fused_forward.1} parent=1 // pred_check_branch
      %41 = sbr.rel (0) target = $region17
    $region16: #{fused_forward.1} parent=1 // pred_region
      %s43 = ssub.s32 2048, 2048
      %44 = vsyncadd [#allocation6], %s43
      %s45 = sshll.u32 [#allocation7], 4
      %s46 = int_to_ptr.vmem [resolvable:$true] %s45
      %51 = dma.hbm_to_vmem [thread:$0]  %s3, 2048, %s46, [#allocation6], 128, 128, 8
    $region17: #{fused_forward.1} parent=1 // pred_fallthru
      _
    // Predicated region
    $region18: #{fused_forward.1} parent=1 // pred_check
      _
    $region19: #{fused_forward.1} parent=1 // pred_check_branch
      %53 = sbr.rel (0) target = $region21
    $region20: #{fused_forward.1} parent=1 // pred_region
      _
    $region21: #{fused_forward.1} parent=1 // pred_fallthru
      _
    // Predicated region
    $region22: #{fused_forward.1} parent=1 // pred_check
      _
    $region23: #{fused_forward.1} parent=1 // pred_check_branch
      %55 = sbr.rel (0) target = $region25
    $region24: #{fused_forward.1} parent=1 // pred_region
      %s57 = ssub.s32 2048, 2048
      %58 = vsyncadd [#allocation9], %s57
      %s59 = sshll.u32 [#allocation8], 4
      %s60 = int_to_ptr.vmem [resolvable:$true] %s59
      %65 = dma.hbm_to_vmem [thread:$0]  %s5, 2048, %s60, [#allocation9], 128, 128, 8
    $region25: #{fused_forward.1} parent=1 // pred_fallthru
      _
    // Predicated region
    $region26: #{fused_forward.1} parent=1 // pred_check
      _
    $region27: #{fused_forward.1} parent=1 // pred_check_branch
      %67 = sbr.rel (0) target = $region29
    $region28: #{fused_forward.1} parent=1 // pred_region
      _
    $region29: #{fused_forward.1} parent=1 // pred_fallthru
      _
    // Predicated region
    $region30: #{fused_forward.1} parent=1 // pred_check
      _
    $region31: #{fused_forward.1} parent=1 // pred_check_branch
      %69 = sbr.rel (0) target = $region33
    $region32: #{fused_forward.1} parent=1 // pred_region
      %70 = dma.done [#allocation3], 64
    $region33: #{fused_forward.1} parent=1 // pred_fallthru
      _
    // Predicated region
    $region34: #{fused_forward.1} parent=1 // pred_check
      _
    $region35: #{fused_forward.1} parent=1 // pred_check_branch
      %72 = sbr.rel (0) target = $region37
    $region36: #{fused_forward.1} parent=1 // pred_region
      %73 = dma.done [#allocation6], 512
    $region37: #{fused_forward.1} parent=1 // pred_fallthru
      _
    // Predicated region
    $region38: #{fused_forward.1} parent=1 // pred_check
      _
    $region39: #{fused_forward.1} parent=1 // pred_check_branch
      %75 = sbr.rel (0) target = $region41
    $region40: #{fused_forward.1} parent=1 // pred_region
      %76 = dma.done [#allocation6], 2048
    $region41: #{fused_forward.1} parent=1 // pred_fallthru
      _
    // Predicated region
    $region42: #{fused_forward.1} parent=1 // pred_check
      _
    $region43: #{fused_forward.1} parent=1 // pred_check_branch
      %78 = sbr.rel (0) target = $region45
    $region44: #{fused_forward.1} parent=1 // pred_region
      %79 = dma.done [#allocation9], 2048
    $region45: #{fused_forward.1} parent=1 // pred_fallthru
      _
    %v80 = vld [vmem:[#allocation2] sm:$0xf]
    %v81 = vld [vmem:[#allocation5] sm:$0xff]
    %v82 = vld [vmem:[#allocation5 + $0x8] sm:$0xff]
    %v83 = vld [vmem:[#allocation5 + $0x10] sm:$0xff]
    %v84 = vld [vmem:[#allocation5 + $0x18] sm:$0xff]
    %v85 = vld [vmem:[%s2] sm:$0x1]
    %v87 = vlaneseq
    %v88 = vshrl.u32 %v87, 7
    %v89 = vsub.s32 0, %v88
    %v90 = vrot.slane %v85, %v89
    %vm92 = vcmask 261120
    %v94 = vsel %vm92, %v80, 0
    %96 = vmatprep.subr.mxu0 0.0
    %97 = vmatpush1.msra.mxu0 %v81
    %98 = vmatprep.subr.mxu0 0.0
    %99 = vmatpush1.msra.mxu0 %v82
    %100 = vmatprep.subr.mxu0 0.0
    %101 = vmatpush1.msra.mxu0 %v83
    %102 = vmatprep.subr.mxu0 0.0
    %103 = vmatpush1.msra.mxu0 %v84
    %104 = vmatprep.subr.mxu0 0.0
    %105 = vmatpush1.msra.mxu0 0.0
    %106 = vmatprep.subr.mxu0 0.0
    %107 = vmatpush1.msra.mxu0 0.0
    %108 = vmatprep.subr.mxu0 0.0
    %109 = vmatpush1.msra.mxu0 0.0
    %110 = vmatprep.subr.mxu0 0.0
    %111 = vmatpush1.msra.mxu0 0.0
    %112 = vmatprep.subr.mxu0 0.0
    %113 = vmatpush1.msra.mxu0 0.0
    %114 = vmatprep.subr.mxu0 0.0
    %115 = vmatpush1.msra.mxu0 0.0
    %116 = vmatprep.subr.mxu0 0.0
    %117 = vmatpush1.msra.mxu0 0.0
    %118 = vmatprep.subr.mxu0 0.0
    %119 = vmatpush1.msra.mxu0 0.0
    %120 = vmatprep.subr.mxu0 0.0
    %121 = vmatpush1.msra.mxu0 0.0
    %122 = vmatprep.subr.mxu0 0.0
    %123 = vmatpush1.msra.mxu0 0.0
    %124 = vmatprep.subr.mxu0 0.0
    %125 = vmatpush1.msra.mxu0 0.0
    %126 = vmatprep.subr.mxu0 0.0
    %127 = vmatpush1.msra.mxu0 0.0
    %128 = vmatprep.subr.mxu0 0.0
    %129 = vmatpush1.msra.mxu0 0.0
    %130 = vmatprep.subr.mxu0 0.0
    %131 = vmatpush1.msra.mxu0 0.0
    %132 = vmatprep.subr.mxu0 0.0
    %133 = vmatpush1.msra.mxu0 0.0
    %134 = vmatprep.subr.mxu0 0.0
    %135 = vmatpush1.msra.mxu0 0.0
    %136 = vmatprep.subr.mxu0 0.0
    %137 = vmatpush1.msra.mxu0 0.0
    %138 = vmatprep.subr.mxu0 0.0
    %139 = vmatpush1.msra.mxu0 0.0
    %140 = vmatprep.subr.mxu0 0.0
    %141 = vmatpush1.msra.mxu0 0.0
    %142 = vmatprep.subr.mxu0 0.0
    %143 = vmatpush1.msra.mxu0 0.0
    %144 = vmatprep.subr.mxu0 0.0
    %145 = vmatpush1.msra.mxu0 0.0
    %146 = vmatprep.subr.mxu0 0.0
    %147 = vmatpush1.msra.mxu0 0.0
    %148 = vmatprep.subr.mxu0 0.0
    %149 = vmatpush1.msra.mxu0 0.0
    %150 = vmatprep.subr.mxu0 0.0
    %151 = vmatpush1.msra.mxu0 0.0
    %152 = vmatprep.subr.mxu0 0.0
    %153 = vmatpush1.msra.mxu0 0.0
    %154 = vmatprep.subr.mxu0 0.0
    %155 = vmatpush1.msra.mxu0 0.0
    %156 = vmatprep.subr.mxu0 0.0
    %157 = vmatpush1.msra.mxu0 0.0
    %158 = vmatprep.subr.mxu0 0.0
    %159 = vmatpush1.msra.mxu0 0.0
    %160 = vmatprep.mubr.f32.mxu0 0.0
    %161 = vmatmul.mubr.f32.gmra.mrb[0].mxu0 %v94
    %v162 = vpop.f32.mrb[0].mxu0
    %v163 = vadd.f32 %v90, %v162
    %v164 = vpop.f32.mrb[0].mxu0
    %165 = vdwg.mxu0
    %v166 = vmul.f32 %v163, 0.5
    %v167 = vtanh.pop %v166
    %v168 = vadd.f32 %v167, 1.0
    %v169 = vmul.f32 %v168, 0.5
    %v170 = vld [vmem:[#allocation7] sm:$0xff]
    %v171 = vld [vmem:[#allocation7 + $0x8] sm:$0xff]
    %v172 = vld [vmem:[#allocation7 + $0x10] sm:$0xff]
    %v173 = vld [vmem:[#allocation7 + $0x18] sm:$0xff]
    %v174 = vld [vmem:[#allocation7 + $0x20] sm:$0xff]
    %v175 = vld [vmem:[#allocation7 + $0x28] sm:$0xff]
    %v176 = vld [vmem:[#allocation7 + $0x30] sm:$0xff]
    %v177 = vld [vmem:[#allocation7 + $0x38] sm:$0xff]
    %v178 = vld [vmem:[#allocation7 + $0x40] sm:$0xff]
    %v179 = vld [vmem:[#allocation7 + $0x48] sm:$0xff]
    %v180 = vld [vmem:[#allocation7 + $0x50] sm:$0xff]
    %v181 = vld [vmem:[#allocation7 + $0x58] sm:$0xff]
    %v182 = vld [vmem:[#allocation7 + $0x60] sm:$0xff]
    %v183 = vld [vmem:[#allocation7 + $0x68] sm:$0xff]
    %v184 = vld [vmem:[#allocation7 + $0x70] sm:$0xff]
    %v185 = vld [vmem:[#allocation7 + $0x78] sm:$0xff]
    %v186 = vld [vmem:[%s4] sm:$0x1]
    %v188 = vlaneseq
    %v189 = vshrl.u32 %v188, 7
    %v190 = vsub.s32 0, %v189
    %v191 = vrot.slane %v186, %v190
    %193 = vmatprep.subr.mxu0 0.0
    %194 = vmatpush1.msra.mxu0 %v170
    %195 = vmatprep.subr.mxu0 0.0
    %196 = vmatpush1.msra.mxu0 %v171
    %197 = vmatprep.subr.mxu0 0.0
    %198 = vmatpush1.msra.mxu0 %v172
    %199 = vmatprep.subr.mxu0 0.0
    %200 = vmatpush1.msra.mxu0 %v173
    %201 = vmatprep.subr.mxu0 0.0
    %202 = vmatpush1.msra.mxu0 %v174
    %203 = vmatprep.subr.mxu0 0.0
    %204 = vmatpush1.msra.mxu0 %v175
    %205 = vmatprep.subr.mxu0 0.0
    %206 = vmatpush1.msra.mxu0 %v176
    %207 = vmatprep.subr.mxu0 0.0
    %208 = vmatpush1.msra.mxu0 %v177
    %209 = vmatprep.subr.mxu0 0.0
    %210 = vmatpush1.msra.mxu0 %v178
    %211 = vmatprep.subr.mxu0 0.0
    %212 = vmatpush1.msra.mxu0 %v179
    %213 = vmatprep.subr.mxu0 0.0
    %214 = vmatpush1.msra.mxu0 %v180
    %215 = vmatprep.subr.mxu0 0.0
    %216 = vmatpush1.msra.mxu0 %v181
    %217 = vmatprep.subr.mxu0 0.0
    %218 = vmatpush1.msra.mxu0 %v182
    %219 = vmatprep.subr.mxu0 0.0
    %220 = vmatpush1.msra.mxu0 %v183
    %221 = vmatprep.subr.mxu0 0.0
    %222 = vmatpush1.msra.mxu0 %v184
    %223 = vmatprep.subr.mxu0 0.0
    %224 = vmatpush1.msra.mxu0 %v185
    %225 = vmatprep.subr.mxu0 0.0
    %226 = vmatpush1.msra.mxu0 0.0
    %227 = vmatprep.subr.mxu0 0.0
    %228 = vmatpush1.msra.mxu0 0.0
    %229 = vmatprep.subr.mxu0 0.0
    %230 = vmatpush1.msra.mxu0 0.0
    %231 = vmatprep.subr.mxu0 0.0
    %232 = vmatpush1.msra.mxu0 0.0
    %233 = vmatprep.subr.mxu0 0.0
    %234 = vmatpush1.msra.mxu0 0.0
    %235 = vmatprep.subr.mxu0 0.0
    %236 = vmatpush1.msra.mxu0 0.0
    %237 = vmatprep.subr.mxu0 0.0
    %238 = vmatpush1.msra.mxu0 0.0
    %239 = vmatprep.subr.mxu0 0.0
    %240 = vmatpush1.msra.mxu0 0.0
    %241 = vmatprep.subr.mxu0 0.0
    %242 = vmatpush1.msra.mxu0 0.0
    %243 = vmatprep.subr.mxu0 0.0
    %244 = vmatpush1.msra.mxu0 0.0
    %245 = vmatprep.subr.mxu0 0.0
    %246 = vmatpush1.msra.mxu0 0.0
    %247 = vmatprep.subr.mxu0 0.0
    %248 = vmatpush1.msra.mxu0 0.0
    %249 = vmatprep.subr.mxu0 0.0
    %250 = vmatpush1.msra.mxu0 0.0
    %251 = vmatprep.subr.mxu0 0.0
    %252 = vmatpush1.msra.mxu0 0.0
    %253 = vmatprep.subr.mxu0 0.0
    %254 = vmatpush1.msra.mxu0 0.0
    %255 = vmatprep.subr.mxu0 0.0
    %256 = vmatpush1.msra.mxu0 0.0
    %257 = vmatprep.mubr.f32.mxu0 0.0
    %258 = vmatmul.mubr.f32.gmra.mrb[0].mxu0 %v169
    %v259 = vpop.f32.mrb[0].mxu0
    %v260 = vadd.f32 %v191, %v259
    %v261 = vpop.f32.mrb[0].mxu0
    %262 = vdwg.mxu0
    %v263 = vld [vmem:[#allocation8] sm:$0xff]
    %v264 = vld [vmem:[#allocation8 + $0x8] sm:$0xff]
    %v265 = vld [vmem:[#allocation8 + $0x10] sm:$0xff]
    %v266 = vld [vmem:[#allocation8 + $0x18] sm:$0xff]
    %v267 = vld [vmem:[#allocation8 + $0x20] sm:$0xff]
    %v268 = vld [vmem:[#allocation8 + $0x28] sm:$0xff]
    %v269 = vld [vmem:[#allocation8 + $0x30] sm:$0xff]
    %v270 = vld [vmem:[#allocation8 + $0x38] sm:$0xff]
    %v271 = vld [vmem:[#allocation8 + $0x40] sm:$0xff]
    %v272 = vld [vmem:[#allocation8 + $0x48] sm:$0xff]
    %v273 = vld [vmem:[#allocation8 + $0x50] sm:$0xff]
    %v274 = vld [vmem:[#allocation8 + $0x58] sm:$0xff]
    %v275 = vld [vmem:[#allocation8 + $0x60] sm:$0xff]
    %v276 = vld [vmem:[#allocation8 + $0x68] sm:$0xff]
    %v277 = vld [vmem:[#allocation8 + $0x70] sm:$0xff]
    %v278 = vld [vmem:[#allocation8 + $0x78] sm:$0xff]
    %v279 = vld [vmem:[%s6] sm:$0x1]
    %v281 = vlaneseq
    %v282 = vshrl.u32 %v281, 7
    %v283 = vsub.s32 0, %v282
    %v284 = vrot.slane %v279, %v283
    %286 = vmatprep.subr.mxu0 0.0
    %287 = vmatpush1.msra.mxu0 %v263
    %288 = vmatprep.subr.mxu0 0.0
    %289 = vmatpush1.msra.mxu0 %v264
    %290 = vmatprep.subr.mxu0 0.0
    %291 = vmatpush1.msra.mxu0 %v265
    %292 = vmatprep.subr.mxu0 0.0
    %293 = vmatpush1.msra.mxu0 %v266
    %294 = vmatprep.subr.mxu0 0.0
    %295 = vmatpush1.msra.mxu0 %v267
    %296 = vmatprep.subr.mxu0 0.0
    %297 = vmatpush1.msra.mxu0 %v268
    %298 = vmatprep.subr.mxu0 0.0
    %299 = vmatpush1.msra.mxu0 %v269
    %300 = vmatprep.subr.mxu0 0.0
    %301 = vmatpush1.msra.mxu0 %v270
    %302 = vmatprep.subr.mxu0 0.0
    %303 = vmatpush1.msra.mxu0 %v271
    %304 = vmatprep.subr.mxu0 0.0
    %305 = vmatpush1.msra.mxu0 %v272
    %306 = vmatprep.subr.mxu0 0.0
    %307 = vmatpush1.msra.mxu0 %v273
    %308 = vmatprep.subr.mxu0 0.0
    %309 = vmatpush1.msra.mxu0 %v274
    %310 = vmatprep.subr.mxu0 0.0
    %311 = vmatpush1.msra.mxu0 %v275
    %312 = vmatprep.subr.mxu0 0.0
    %313 = vmatpush1.msra.mxu0 %v276
    %314 = vmatprep.subr.mxu0 0.0
    %315 = vmatpush1.msra.mxu0 %v277
    %316 = vmatprep.subr.mxu0 0.0
    %317 = vmatpush1.msra.mxu0 %v278
    %318 = vmatprep.subr.mxu0 0.0
    %319 = vmatpush1.msra.mxu0 0.0
    %320 = vmatprep.subr.mxu0 0.0
    %321 = vmatpush1.msra.mxu0 0.0
    %322 = vmatprep.subr.mxu0 0.0
    %323 = vmatpush1.msra.mxu0 0.0
    %324 = vmatprep.subr.mxu0 0.0
    %325 = vmatpush1.msra.mxu0 0.0
    %326 = vmatprep.subr.mxu0 0.0
    %327 = vmatpush1.msra.mxu0 0.0
    %328 = vmatprep.subr.mxu0 0.0
    %329 = vmatpush1.msra.mxu0 0.0
    %330 = vmatprep.subr.mxu0 0.0
    %331 = vmatpush1.msra.mxu0 0.0
    %332 = vmatprep.subr.mxu0 0.0
    %333 = vmatpush1.msra.mxu0 0.0
    %334 = vmatprep.subr.mxu0 0.0
    %335 = vmatpush1.msra.mxu0 0.0
    %336 = vmatprep.subr.mxu0 0.0
    %337 = vmatpush1.msra.mxu0 0.0
    %338 = vmatprep.subr.mxu0 0.0
    %339 = vmatpush1.msra.mxu0 0.0
    %340 = vmatprep.subr.mxu0 0.0
    %341 = vmatpush1.msra.mxu0 0.0
    %342 = vmatprep.subr.mxu0 0.0
    %343 = vmatpush1.msra.mxu0 0.0
    %344 = vmatprep.subr.mxu0 0.0
    %345 = vmatpush1.msra.mxu0 0.0
    %346 = vmatprep.subr.mxu0 0.0
    %347 = vmatpush1.msra.mxu0 0.0
    %348 = vmatprep.subr.mxu0 0.0
    %349 = vmatpush1.msra.mxu0 0.0
    %350 = vmatprep.mubr.f32.mxu0 0.0
    %351 = vmatmul.mubr.f32.gmra.mrb[0].mxu0 %v260
    %v352 = vpop.f32.mrb[0].mxu0
    %v353 = vadd.f32 %v284, %v352
    %v354 = vpop.f32.mrb[0].mxu0
    %355 = vdwg.mxu0
    %vm356 = vcmask 1043456
    %v357 = vsel %vm356, %v353, -inf
    %358 = vmax.xlane.f32.xlu0 %v357
    %v359 = vpop.xlane.xlu0 %358
    %v360 = vsub.f32 %v353, %v359
    %v361 = vmul.f32 %v360, 1.442695
    %v362 = vpow.pop %v361
    %v363 = vsel %vm356, %v362, 0.0
    %364 = vadd.xlane.f32.xlu0 %v363
    %v365 = vpop.xlane.xlu0 %364
    %v366 = vrcp.pop %v365
    %v367 = vmul.f32 %v362, %v366
    %368 = vst [vmem:[#allocation10] sm:$0xf] %v367
    // Predicated region
    $region46: #{fused_forward.1} parent=1 // pred_check
      _
    $region47: #{fused_forward.1} parent=1 // pred_check_branch
      %370 = sbr.rel (0) target = $region49
    $region48: #{fused_forward.1} parent=1 // pred_region
      %s372 = ssub.s32 64, 64
      %373 = vsyncadd [#allocation4], %s372
      %s375 = sshll.u32 [#allocation10], 4
      %s376 = int_to_ptr.vmem [resolvable:$true] %s375
      %378 = dma.vmem_to_hbm [thread:$0]  %s376, 64, %s7, [#allocation4]
    $region49: #{fused_forward.1} parent=1 // pred_fallthru
      _
    // Predicated region
    $region50: #{fused_forward.1} parent=1 // pred_check
      _
    $region51: #{fused_forward.1} parent=1 // pred_check_branch
      %380 = sbr.rel (0) target = $region53
    $region52: #{fused_forward.1} parent=1 // pred_region
      %381 = dma.done [#allocation4], 64
    $region53: #{fused_forward.1} parent=1 // pred_fallthru
      _
    %382 = vsyncpa [#allocation3], 1
    %383 = vsyncpa [#allocation6], 1
    %384 = vsyncpa [#allocation9], 1
    %385 = vsyncpa [#allocation4], 1

</llo_original>
